<compile_context>
chip_gen: v6e
topology: v6e:2x2x1
jax: 0.10.0
libtpu: 0.0.40
codegen_flags: <defaults>
</compile_context>

<pallas_src>
import jax
import jax.numpy as jnp
from jax.experimental import pallas as pl
from jax.experimental.pallas import tpu as pltpu


def _round_up(x, m):
    return ((x + m - 1) // m) * m


def _sublane_multiple(dtype):
    itemsize = jnp.dtype(dtype).itemsize
    return {4: 8, 2: 16, 1: 32}.get(itemsize, 8)


def meta_aconc_kernel(x_ref, prm_ref, o_ref):
    # x_ref block: (TM, TC).  prm_ref block: (TM, 3) = [dp, p2, beta] per row.
    x = x_ref[...].astype(jnp.float32)
    dp = prm_ref[:, 0:1]      # p1 - p2 (precomputed in wrapper)
    p2 = prm_ref[:, 1:2]
    beta = prm_ref[:, 2:3]
    dpx = dp * x
    o_ref[...] = (dpx * jax.nn.sigmoid(beta * dpx) + p2 * x).astype(o_ref.dtype)


def _compute_beta(x_nchw, w1, b1, w2, b2):
    """beta = sigmoid(fc2(fc1(mean_{H,W}(x)))), batched over N. Tiny work: done in JAX."""
    y = x_nchw.astype(jnp.float32).mean(axis=(2, 3))                      # (N, C1)
    h = jnp.einsum('nc,oc->no', y, w1, precision='highest') + b1[:, 0]    # (N, C2)
    z = jnp.einsum('no,co->nc', h, w2, precision='highest') + b2[:, 0]    # (N, C1)
    return jax.nn.sigmoid(z)                                              # (N, C1)


def meta_aconc(x_nchw, p1, p2, w1, b1, w2, b2, *, tile_rows=256, tile_cols=2048):
    """x_nchw: (N, C1, H, W). Params:
       p1, p2: (C1, 1); w1: (C2, C1); b1: (C2, 1); w2: (C1, C2); b2: (C1, 1)."""
    N, C1, H, W = x_nchw.shape
    HW = H * W
    rows = N * C1
    dtype = x_nchw.dtype
    bpe = jnp.dtype(dtype).itemsize
    sub = _sublane_multiple(dtype)

    # ---- hoisted channel-MLP (batched once for all N) ----
    beta = _compute_beta(x_nchw, w1, b1, w2, b2)                          # (N, C1)

    # ---- collapse (N, C1) -> dense sublane row axis; pack per-row scalars ----
    x2d = x_nchw.reshape(rows, HW)
    dp_r = jnp.broadcast_to((p1 - p2).reshape(1, C1), (N, C1)).reshape(rows)
    p2_r = jnp.broadcast_to(p2.reshape(1, C1), (N, C1)).reshape(rows)
    prm = jnp.stack(
        [dp_r.astype(jnp.float32), p2_r.astype(jnp.float32),
         beta.reshape(rows).astype(jnp.float32)], axis=1)                 # (rows, 3)

    # ---- tile selection (no physical padding; ragged edge blocks are clipped) ----
    hw128 = _round_up(HW, 128)
    if hw128 <= tile_cols:
        tc = HW                       # full last dim: contiguous DMA, single column block
    else:
        tc = _round_up(tile_cols, 128)
    n_col = pl.cdiv(HW, tc)

    tm = min(_round_up(tile_rows, sub), _round_up(rows, sub))
    n_row = pl.cdiv(rows, tm)
    # v7x megacore: keep >= 2 parallel blocks when the problem allows it.
    if n_row * n_col < 2 and rows > sub:
        tm = max(sub, _round_up(pl.cdiv(rows, 2), sub))
        n_row = pl.cdiv(rows, tm)

    grid = (n_row, n_col)

    # Explicit VMEM budget: x + out double-buffered, plus the lane-padded
    # (tm, 128) param buffers (2x), plus headroom.  Portable v5e/v6e/v7x.
    tile_bytes = tm * tc * bpe
    vmem_limit = int(4 * tile_bytes + 2 * tm * 128 * 4 + (2 << 20))
    vmem_limit = max(min(vmem_limit, 64 << 20), 4 << 20)

    out = pl.pallas_call(
        meta_aconc_kernel,
        out_shape=jax.ShapeDtypeStruct((rows, HW), dtype),
        grid=grid,
        in_specs=[
            pl.BlockSpec((tm, tc), lambda i, j: (i, j)),   # x
            pl.BlockSpec((tm, 3), lambda i, j: (i, 0)),    # packed [dp, p2, beta]
        ],
        out_specs=pl.BlockSpec((tm, tc), lambda i, j: (i, j)),
        compiler_params=pltpu.CompilerParams(
            dimension_semantics=("parallel", "parallel"),
            vmem_limit_bytes=vmem_limit),
    )(x2d, prm)

    return out.reshape(N, C1, H, W)


def meta_aconc_ref(x, p1, p2, w1, b1, w2, b2):
    # pure-JAX reference matching the PyTorch forward
    beta = _compute_beta(x, w1, b1, w2, b2)[:, :, None, None]             # (N, C1, 1, 1)
    p1b = p1[None, :, :, None]                                            # (1, C1, 1, 1)
    p2b = p2[None, :, :, None]
    dpx = (p1b - p2b) * x
    return dpx * jax.nn.sigmoid(beta * dpx) + p2b * x


if __name__ == "__main__":
    # Module config: c1 = 4 channels, r = 16 -> c2 = max(16, 4 // 16) = 16
    N, C1, H, W = 2, 4, 16, 16
    r = 16
    C2 = max(r, C1 // r)

    key = jax.random.PRNGKey(0)
    kx, kp1, kp2, kw1, kb1, kw2, kb2 = jax.random.split(key, 7)

    x = jax.random.normal(kx, (N, C1, H, W), dtype=jnp.float32)
    # Parameters, deterministic synthetic init (shapes per the module __init__).
    p1 = jax.random.normal(kp1, (C1, 1), dtype=jnp.float32)          # torch (1,C1,1,1)
    p2 = jax.random.normal(kp2, (C1, 1), dtype=jnp.float32)
    w1 = jax.random.normal(kw1, (C2, C1), dtype=jnp.float32) * 0.1   # Conv2d(C1->C2, k=1)
    b1 = jax.random.normal(kb1, (C2, 1), dtype=jnp.float32) * 0.1
    w2 = jax.random.normal(kw2, (C1, C2), dtype=jnp.float32) * 0.1   # Conv2d(C2->C1, k=1)
    b2 = jax.random.normal(kb2, (C1, 1), dtype=jnp.float32) * 0.1

    out = meta_aconc(x, p1, p2, w1, b1, w2, b2)
    out = jax.block_until_ready(out)

    ref = meta_aconc_ref(x, p1, p2, w1, b1, w2, b2)
    assert out.shape == (N, C1, H, W)
    assert jnp.allclose(out, ref, atol=1e-5, rtol=1e-5), "mismatch vs reference"

    print("KERNEL_OK")
</pallas_src>

<mosaic_0001>
module attributes {stable_mosaic.version = 11 : i64} {
  func.func @meta_aconc_kernel(%arg0: i32, %arg1: i32, %arg2: memref<8x256xf32, #tpu.memory_space<vmem>>, %arg3: memref<8x3xf32, #tpu.memory_space<vmem>>, %arg4: memref<8x256xf32, #tpu.memory_space<vmem>>) attributes {dimension_semantics = [#tpu.dimension_semantics<parallel>, #tpu.dimension_semantics<parallel>], iteration_bounds = array<i64: 1, 1>, scalar_prefetch = 0 : i64, scratch_operands = 0 : i64, tpu.core_type = #tpu.core_type<tc>, window_params = [{transform_indices = @transform_0, window_bounds = array<i64: 8, 256>}, {transform_indices = @transform_1, window_bounds = array<i64: 8, 3>}, {transform_indices = @transform_2, window_bounds = array<i64: 8, 256>}]} {
    %c0 = arith.constant 0 : index
    %c0_0 = arith.constant 0 : index
    %0 = vector.load %arg2[%c0, %c0_0] : memref<8x256xf32, #tpu.memory_space<vmem>>, vector<8x256xf32>
    %c0_1 = arith.constant 0 : index
    %c0_2 = arith.constant 0 : index
    %1 = vector.load %arg3[%c0_1, %c0_2] : memref<8x3xf32, #tpu.memory_space<vmem>>, vector<8x1xf32>
    %c0_3 = arith.constant 0 : index
    %c1 = arith.constant 1 : index
    %2 = vector.load %arg3[%c0_3, %c1] : memref<8x3xf32, #tpu.memory_space<vmem>>, vector<8x1xf32>
    %c0_4 = arith.constant 0 : index
    %c2 = arith.constant 2 : index
    %3 = vector.load %arg3[%c0_4, %c2] : memref<8x3xf32, #tpu.memory_space<vmem>>, vector<8x1xf32>
    %4 = vector.broadcast %1 : vector<8x1xf32> to vector<8x256xf32>
    %5 = arith.mulf %4, %0 : vector<8x256xf32>
    %6 = vector.broadcast %3 : vector<8x1xf32> to vector<8x256xf32>
    %7 = arith.mulf %6, %5 : vector<8x256xf32>
    %8 = arith.negf %7 : vector<8x256xf32>
    %9 = math.exp %8 : vector<8x256xf32>
    %cst = arith.constant 1.000000e+00 : f32
    %10 = vector.broadcast %cst : f32 to vector<8x256xf32>
    %11 = arith.addf %10, %9 : vector<8x256xf32>
    %12 = arith.divf %10, %11 : vector<8x256xf32>
    %13 = arith.mulf %5, %12 : vector<8x256xf32>
    %14 = vector.broadcast %2 : vector<8x1xf32> to vector<8x256xf32>
    %15 = arith.mulf %14, %0 : vector<8x256xf32>
    %16 = arith.addf %13, %15 : vector<8x256xf32>
    %c0_5 = arith.constant 0 : index
    %c0_6 = arith.constant 0 : index
    %17 = vector.load %arg4[%c0_5, %c0_6] : memref<8x256xf32, #tpu.memory_space<vmem>>, vector<8x256xf32>
    tpu.vector_store %arg4[%c0_5, %c0_6], %16 {strides = array<i32>} : memref<8x256xf32, #tpu.memory_space<vmem>>, vector<8x256xf32>,
    return
  }
  func.func @transform_0(%arg0: i32, %arg1: i32) -> (i32, i32) {
    %c0_i32 = arith.constant 0 : i32
    return %arg0, %arg1 : i32, i32
  }
  func.func @transform_1(%arg0: i32, %arg1: i32) -> (i32, i32) {
    %c0_i32 = arith.constant 0 : i32
    %c0_i32_0 = arith.constant 0 : i32
    return %arg0, %c0_i32 : i32, i32
  }
  func.func @transform_2(%arg0: i32, %arg1: i32) -> (i32, i32) {
    %c0_i32 = arith.constant 0 : i32
    return %arg0, %arg1 : i32, i32
  }
}

</mosaic_0001>

<llo_original>
// kernel: tpu_custom_call.1
$region0: #{tpu_custom_call.1}
  #allocation0 [shape = 'u32[]', space=smem, size = 0x4, offset = 0x4, fixed_abs, tag = 'smem constant byte address 0x4 - core index']
  #allocation1 [shape = 'u32[144,128]{1,0:T(1,128)}', space=vmem, size = 0x12000, scoped, tag = 'internal scratch']
  %s0 = inlined_call_operand.hbm [shape: f32[8,256], index: 0, kind: input, shape index: {}]
  %s1 = inlined_call_operand.vmem [shape: f32[8,3], index: 1, kind: input, shape index: {}]
  %s2 = inlined_call_operand.hbm [shape: f32[8,256], index: 2, kind: output, shape index: {}]
  %s3 = sld [smem:[#allocation0]]
  $region22: #{tpu_custom_call.1} parent=0
    _
  %s5 = ssub.s32 1, %s3
  %s6 = scalar_select 0, %s5, %s3
  $region1: #{tpu_custom_call.1} parent=0
    #allocation2 [shape = 'u8[8192]{0}', space=vmem, size = 0x2000, scoped, tag = 'input window, operand 0, single buffered']
    #allocation3 [shape = 's32[1]{0}', space=sflag, size = 0x4, scoped, tag = 'scoped memory for tpu_custom_call.1']
    #allocation4 [shape = 's32[1]{0}', space=sflag, size = 0x4, scoped, tag = 'scoped memory for tpu_custom_call.1']
    #allocation5 [shape = 'u8[8192]{0}', space=vmem, size = 0x2000, scoped, tag = 'output window, operand 0, single buffered']
    %7 = vsyncpa [#allocation3], 0
    %8 = vsyncpa [#allocation4], 0
    // Predicated region
    $region2: #{tpu_custom_call.1} parent=1 // pred_check
      _
    $region3: #{tpu_custom_call.1} parent=1 // pred_check_branch
      %10 = sbr.rel (0) target = $region5
    $region4: #{tpu_custom_call.1} parent=1 // pred_region
      %s12 = ssub.s32 256, 256
      %13 = vsyncadd [#allocation3], %s12
      %s15 = sshll.u32 [#allocation2], 4
      %s16 = int_to_ptr.vmem [resolvable:$true] %s15
      %18 = dma.hbm_to_vmem [thread:$0]  %s0, 256, %s16, [#allocation3]
    $region5: #{tpu_custom_call.1} parent=1 // pred_fallthru
      _
    // Predicated region
    $region6: #{tpu_custom_call.1} parent=1 // pred_check
      _
    $region7: #{tpu_custom_call.1} parent=1 // pred_check_branch
      %20 = sbr.rel (0) target = $region9
    $region8: #{tpu_custom_call.1} parent=1 // pred_region
      _
    $region9: #{tpu_custom_call.1} parent=1 // pred_fallthru
      _
    // Predicated region
    $region10: #{tpu_custom_call.1} parent=1 // pred_check
      _
    $region11: #{tpu_custom_call.1} parent=1 // pred_check_branch
      %22 = sbr.rel (0) target = $region13
    $region12: #{tpu_custom_call.1} parent=1 // pred_region
      %23 = dma.done [#allocation3], 256
    $region13: #{tpu_custom_call.1} parent=1 // pred_fallthru
      _
    %v24 = vld [vmem:[#allocation2] sm:$0xff]
    %v25 = vld [vmem:[#allocation2 + $0x8] sm:$0xff]
    %v26 = vld [vmem:[%s1] sm:$0xff]
    %28 = vset.pattern.permute.xlu0 0
    %29 = vperm.xlu0 %28, %v26
    %v30 = vpop.permute.xlu0 %29
    %v32 = vmul.f32 %v30, %v24
    %v33 = vmul.f32 %v30, %v25
    %34 = vset.pattern.permute.xlu0 2
    %35 = vperm.xlu0 %34, %v26
    %v36 = vpop.permute.xlu0 %35
    %v38 = vmul.f32 %v36, %v32
    %v39 = vmul.f32 %v36, %v33
    %v40 = vxor.u32 %v38, 2147483648
    %v41 = vxor.u32 %v39, 2147483648
    %v42 = vmul.f32 %v40, 1.442695
    %v43 = vpow.pop %v42
    %v44 = vmul.f32 %v41, 1.442695
    %v45 = vpow.pop %v44
    %v46 = vadd.f32 %v43, 1.0
    %v47 = vadd.f32 %v45, 1.0
    %v48 = vrcp.pop %v46
    %v49 = vmul.f32 1.0, %v48
    %v50 = vrcp.pop %v47
    %v51 = vmul.f32 1.0, %v50
    %v52 = vmul.f32 %v32, %v49
    %v53 = vmul.f32 %v33, %v51
    %54 = vset.pattern.permute.xlu0 1
    %55 = vperm.xlu0 %54, %v26
    %v56 = vpop.permute.xlu0 %55
    %v58 = vmul.f32 %v56, %v24
    %v59 = vmul.f32 %v56, %v25
    %v60 = vadd.f32 %v52, %v58
    %v61 = vadd.f32 %v53, %v59
    %62 = vst [vmem:[#allocation5] sm:$0xff] %v60
    %63 = vst [vmem:[#allocation5 + $0x8] sm:$0xff] %v61
    // Predicated region
    $region14: #{tpu_custom_call.1} parent=1 // pred_check
      _
    $region15: #{tpu_custom_call.1} parent=1 // pred_check_branch
      %65 = sbr.rel (0) target = $region17
    $region16: #{tpu_custom_call.1} parent=1 // pred_region
      %s67 = ssub.s32 256, 256
      %68 = vsyncadd [#allocation4], %s67
      %s70 = sshll.u32 [#allocation5], 4
      %s71 = int_to_ptr.vmem [resolvable:$true] %s70
      %73 = dma.vmem_to_hbm [thread:$0]  %s71, 256, %s2, [#allocation4]
    $region17: #{tpu_custom_call.1} parent=1 // pred_fallthru
      _
    // Predicated region
    $region18: #{tpu_custom_call.1} parent=1 // pred_check
      _
    $region19: #{tpu_custom_call.1} parent=1 // pred_check_branch
      %75 = sbr.rel (0) target = $region21
    $region20: #{tpu_custom_call.1} parent=1 // pred_region
      %76 = dma.done [#allocation4], 256
    $region21: #{tpu_custom_call.1} parent=1 // pred_fallthru
      _
    %77 = vsyncpa [#allocation3], 1
    %78 = vsyncpa [#allocation4], 1

</llo_original>
